<compile_context>
chip_gen: v7x
topology: tpu7x:2x2x1
jax: 0.10.0
libtpu: 0.0.40
codegen_flags: <defaults>
</compile_context>

<pallas_src>
import math

import jax
import jax.numpy as jnp
from jax.experimental import pallas as pl
from jax.experimental.pallas import tpu as pltpu

K_IN = 784          # true input features (28*28); stays un-padded in HBM
N_OUT = 10          # true number of classes
N_PAD = 128         # lane-dense output / class width
_NEG_BIG = -1e30    # effectively -inf for padded classes (exp underflows to 0)


def _round_up(n, m):
    return ((n + m - 1) // m) * m


def _net_l_kernel(x_ref, w_ref, b_ref, o_ref):
    # x_ref: [TB, 784] f32 (Mosaic lane-pads to 896 in VMEM)
    # w_ref: [784, 128] f32 (VMEM-resident), b_ref: [1, 128] f32
    # o_ref: [TB, 128] f32
    logits = jnp.dot(x_ref[...], w_ref[...],
                     preferred_element_type=jnp.float32) + b_ref[...]
    # numerically-stable log_softmax over the class axis; padded classes carry
    # a -1e30 bias so they never influence the max / sum.
    m = jnp.max(logits, axis=-1, keepdims=True)
    shifted = logits - m
    lse = jnp.log(jnp.sum(jnp.exp(shifted), axis=-1, keepdims=True))
    o_ref[...] = (shifted - lse).astype(o_ref.dtype)


def net_l_forward(x, w, b, *, tile_b=1024):
    """x: any shape with prod(trailing dims) == 784 (e.g. [B,1,28,28]);
    w: [784, 10] (transposed vs torch's [10, 784]); b: [10].
    Returns log-probabilities of shape [B, 10] (f32)."""
    x2 = x.reshape(-1, K_IN)
    if x2.dtype != jnp.float32:
        x2 = x2.astype(jnp.float32)
    B = x2.shape[0]

    # --- batch tiling --------------------------------------------------------
    tb = min(tile_b, _round_up(B, 16))          # multiple of 16 (bf16-safe too)
    # v7x: aim for >= 2 grid steps so the "parallel" axis can be split across
    # both TensorCores instead of pinning all work on one.
    if _round_up(B, tb) // tb < 2:
        half = _round_up((B + 1) // 2, 16)
        if 16 <= half < tb:
            tb = half
    b_pad = _round_up(B, tb)
    if b_pad != B:
        # pad only along batch (cheap, one tile at most); rows trimmed below
        x2 = jnp.pad(x2, ((0, b_pad - B), (0, 0)))

    # --- tiny class-padded weight / bias (few hundred KiB, one-time) --------
    w_p = jnp.zeros((K_IN, N_PAD), jnp.float32).at[:, :N_OUT].set(
        w.astype(jnp.float32))
    b_p = jnp.full((1, N_PAD), _NEG_BIG, jnp.float32).at[0, :N_OUT].set(
        b.astype(jnp.float32))

    grid = (b_pad // tb,)

    out = pl.pallas_call(
        _net_l_kernel,
        out_shape=jax.ShapeDtypeStruct((b_pad, N_PAD), jnp.float32),
        grid_spec=pltpu.PrefetchScalarGridSpec(
            num_scalar_prefetch=0,
            grid=grid,
            in_specs=[
                pl.BlockSpec((tb, K_IN), lambda i: (i, 0)),     # x: streamed
                pl.BlockSpec((K_IN, N_PAD), lambda i: (0, 0)),  # W: resident
                pl.BlockSpec((1, N_PAD), lambda i: (0, 0)),     # b: resident
            ],
            out_specs=pl.BlockSpec((tb, N_PAD), lambda i: (i, 0)),
        ),
        compiler_params=pltpu.CompilerParams(
            dimension_semantics=("parallel",),       # shards over v7x's 2 TCs
            vmem_limit_bytes=32 * 1024 * 1024,       # ~8 MiB used at tb=1024
        ),
        cost_estimate=pl.CostEstimate(
            flops=2 * b_pad * K_IN * N_PAD,
            bytes_accessed=(b_pad * K_IN * 4 + K_IN * N_PAD * 4
                            + N_PAD * 4 + b_pad * N_PAD * 4),
            transcendentals=b_pad * N_PAD,
        ),
    )(x2, w_p, b_p)

    # trim padded batch rows and padded classes
    # (a fused consumer could read the padded [b_pad, 128] buffer directly and
    #  skip this extra pass over the output)
    return out[:B, :N_OUT]


def init_params(key):
    # Deterministic init mimicking nn.Linear(784, 10) default:
    # U(-1/sqrt(784), 1/sqrt(784)) for both weight and bias.
    k_w, k_b = jax.random.split(key)
    bound = 1.0 / math.sqrt(784.0)
    w = jax.random.uniform(k_w, (K_IN, N_OUT), jnp.float32, -bound, bound)
    b = jax.random.uniform(k_b, (N_OUT,), jnp.float32, -bound, bound)
    return w, b


if __name__ == "__main__":
    key = jax.random.PRNGKey(0)
    k_x, k_p = jax.random.split(key)

    # MNIST-like input: batch=8, 1x28x28 (NCHW); forward flattens to [8, 784].
    x = jax.random.normal(k_x, (8, 1, 28, 28), jnp.float32)
    w, b = init_params(k_p)

    out = net_l_forward(x, w, b)
    out = jax.block_until_ready(out)
    assert out.shape == (8, 10)

    # sanity 1: log_softmax rows should (approximately) exp-sum to 1
    row_sums = jnp.sum(jnp.exp(out), axis=1)
    assert bool(jnp.all(jnp.abs(row_sums - 1.0) < 1e-3))

    # sanity 2: matches an f32 JAX reference (MXU default-precision tolerance)
    ref = jax.nn.log_softmax(x.reshape(-1, K_IN) @ w + b, axis=-1)
    assert bool(jnp.max(jnp.abs(out - ref)) < 5e-2)

    print("KERNEL_OK")
</pallas_src>

<mosaic_0001>
module attributes {stable_mosaic.version = 11 : i64} {
  func.func @_net_l_kernel(%arg0: i32, %arg1: memref<16x784xf32, #tpu.memory_space<vmem>>, %arg2: memref<784x128xf32, #tpu.memory_space<vmem>>, %arg3: memref<1x128xf32, #tpu.memory_space<vmem>>, %arg4: memref<16x128xf32, #tpu.memory_space<vmem>>) attributes {dimension_semantics = [#tpu.dimension_semantics<parallel>], iteration_bounds = array<i64: 1>, scalar_prefetch = 0 : i64, scratch_operands = 0 : i64, tpu.core_type = #tpu.core_type<tc>, window_params = [{transform_indices = @transform_0, window_bounds = array<i64: 16, 784>}, {pipeline_mode = #tpu.pipeline_mode<synchronous>, transform_indices = @transform_1, window_bounds = array<i64: 784, 128>}, {pipeline_mode = #tpu.pipeline_mode<synchronous>, transform_indices = @transform_2, window_bounds = array<i64: 1, 128>}, {transform_indices = @transform_3, window_bounds = array<i64: 16, 128>}]} {
    %c0 = arith.constant 0 : index
    %c0_0 = arith.constant 0 : index
    %0 = vector.load %arg1[%c0, %c0_0] : memref<16x784xf32, #tpu.memory_space<vmem>>, vector<16x784xf32>
    %c0_1 = arith.constant 0 : index
    %c0_2 = arith.constant 0 : index
    %1 = vector.load %arg2[%c0_1, %c0_2] : memref<784x128xf32, #tpu.memory_space<vmem>>, vector<784x128xf32>
    %cst = arith.constant dense<0.000000e+00> : vector<16x128xf32>
    %2 = tpu.matmul %0, %1, %cst {dimension_numbers = #tpu.dot_dimension_numbers<[1], [0], [0], [1], [0, 0, 1, 1], [], []>} : vector<16x784xf32>, vector<784x128xf32>, vector<16x128xf32> -> vector<16x128xf32>
    %c0_3 = arith.constant 0 : index
    %c0_4 = arith.constant 0 : index
    %3 = vector.load %arg3[%c0_3, %c0_4] : memref<1x128xf32, #tpu.memory_space<vmem>>, vector<1x128xf32>
    %4 = vector.broadcast %3 : vector<1x128xf32> to vector<16x128xf32>
    %5 = arith.addf %2, %4 : vector<16x128xf32>
    %cst_5 = arith.constant dense<0xFF800000> : vector<16xf32>
    %6 = vector.multi_reduction <maximumf>, %5, %cst_5 [1] : vector<16x128xf32> to vector<16xf32>
    %7 = vector.shape_cast %6 : vector<16xf32> to vector<16x1xf32>
    %8 = vector.broadcast %7 : vector<16x1xf32> to vector<16x128xf32>
    %9 = arith.subf %5, %8 : vector<16x128xf32>
    %10 = math.exp %9 : vector<16x128xf32>
    %cst_6 = arith.constant dense<0.000000e+00> : vector<16xf32>
    %11 = vector.multi_reduction <add>, %10, %cst_6 [1] : vector<16x128xf32> to vector<16xf32>
    %12 = vector.shape_cast %11 : vector<16xf32> to vector<16x1xf32>
    %13 = math.log %12 : vector<16x1xf32>
    %14 = vector.broadcast %13 : vector<16x1xf32> to vector<16x128xf32>
    %15 = arith.subf %9, %14 : vector<16x128xf32>
    %c0_7 = arith.constant 0 : index
    %c0_8 = arith.constant 0 : index
    %16 = vector.load %arg4[%c0_7, %c0_8] : memref<16x128xf32, #tpu.memory_space<vmem>>, vector<16x128xf32>
    tpu.vector_store %arg4[%c0_7, %c0_8], %15 {strides = array<i32>} : memref<16x128xf32, #tpu.memory_space<vmem>>, vector<16x128xf32>,
    return
  }
  func.func @transform_0(%arg0: i32) -> (i32, i32) {
    %c0_i32 = arith.constant 0 : i32
    %c0_i32_0 = arith.constant 0 : i32
    return %arg0, %c0_i32 : i32, i32
  }
  func.func @transform_1(%arg0: i32) -> (i32, i32) {
    %c0_i32 = arith.constant 0 : i32
    %c0_i32_0 = arith.constant 0 : i32
    %c0_i32_1 = arith.constant 0 : i32
    return %c0_i32, %c0_i32_0 : i32, i32
  }
  func.func @transform_2(%arg0: i32) -> (i32, i32) {
    %c0_i32 = arith.constant 0 : i32
    %c0_i32_0 = arith.constant 0 : i32
    %c0_i32_1 = arith.constant 0 : i32
    return %c0_i32, %c0_i32_0 : i32, i32
  }
  func.func @transform_3(%arg0: i32) -> (i32, i32) {
    %c0_i32 = arith.constant 0 : i32
    %c0_i32_0 = arith.constant 0 : i32
    return %arg0, %c0_i32 : i32, i32
  }
}

</mosaic_0001>

<llo_original>
// kernel: tpu_custom_call.1
$region0: #{tpu_custom_call.1}
  #allocation0 [shape = 'u32[]', space=smem, size = 0x4, offset = 0x4, fixed_abs, tag = 'smem constant byte address 0x4 - core index']
  #allocation1 [shape = 'u32[144,128]{1,0:T(1,128)}', space=vmem, size = 0x12000, scoped, tag = 'internal scratch']
  %s0 = inlined_call_operand.hbm [shape: f32[16,784], index: 0, kind: input, shape index: {}]
  %s1 = inlined_call_operand.hbm [shape: f32[784,128], index: 1, kind: input, shape index: {}]
  %s2 = inlined_call_operand.vmem [shape: f32[1,128], index: 2, kind: input, shape index: {}]
  %s3 = inlined_call_operand.hbm [shape: f32[16,128], index: 3, kind: output, shape index: {}]
  %s4 = sld [smem:[#allocation0]]
  $region30: #{tpu_custom_call.1} parent=0
    _
  %s6 = ssub.s32 1, %s4
  %s7 = scalar_select 0, %s6, %s4
  $region1: #{tpu_custom_call.1} parent=0
    #allocation2 [shape = 'u8[57344]{0}', space=vmem, size = 0xe000, scoped, tag = 'input window, operand 0, single buffered']
    #allocation3 [shape = 's32[1]{0}', space=sflag, size = 0x4, scoped, tag = 'scoped memory for tpu_custom_call.1']
    #allocation4 [shape = 's32[1]{0}', space=sflag, size = 0x4, scoped, tag = 'scoped memory for tpu_custom_call.1']
    #allocation5 [shape = 'u8[401408]{0}', space=vmem, size = 0x62000, scoped, tag = 'input window, operand 1, single buffered']
    #allocation6 [shape = 's32[1]{0}', space=sflag, size = 0x4, scoped, tag = 'scoped memory for tpu_custom_call.1']
    #allocation7 [shape = 'u8[8192]{0}', space=vmem, size = 0x2000, scoped, tag = 'output window, operand 0, single buffered']
    %8 = vsyncpa [#allocation3], 0
    %9 = vsyncpa [#allocation6], 0
    %10 = vsyncpa [#allocation4], 0
    // Predicated region
    $region2: #{tpu_custom_call.1} parent=1 // pred_check
      _
    $region3: #{tpu_custom_call.1} parent=1 // pred_check_branch
      %12 = sbr.rel (0) target = $region5
    $region4: #{tpu_custom_call.1} parent=1 // pred_region
      %s14 = ssub.s32 1792, 1792
      %15 = vsyncadd [#allocation3], %s14
      %s16 = sshll.u32 [#allocation2], 4
      %s17 = int_to_ptr.vmem [resolvable:$true] %s16
      %22 = dma.hbm_to_vmem [thread:$0]  %s0, 1792, %s17, [#allocation3], 896, 896, 56
    $region5: #{tpu_custom_call.1} parent=1 // pred_fallthru
      _
    // Predicated region
    $region6: #{tpu_custom_call.1} parent=1 // pred_check
      _
    $region7: #{tpu_custom_call.1} parent=1 // pred_check_branch
      %24 = sbr.rel (0) target = $region9
    $region8: #{tpu_custom_call.1} parent=1 // pred_region
      %s26 = ssub.s32 12544, 12544
      %27 = vsyncadd [#allocation6], %s26
      %s28 = sshll.u32 [#allocation5], 4
      %s29 = int_to_ptr.vmem [resolvable:$true] %s28
      %34 = dma.hbm_to_vmem [thread:$0]  %s1, 12544, %s29, [#allocation6], 128, 128, 8
    $region9: #{tpu_custom_call.1} parent=1 // pred_fallthru
      _
    // Predicated region
    $region10: #{tpu_custom_call.1} parent=1 // pred_check
      _
    $region11: #{tpu_custom_call.1} parent=1 // pred_check_branch
      %36 = sbr.rel (0) target = $region13
    $region12: #{tpu_custom_call.1} parent=1 // pred_region
      _
    $region13: #{tpu_custom_call.1} parent=1 // pred_fallthru
      _
    // Predicated region
    $region14: #{tpu_custom_call.1} parent=1 // pred_check
      _
    $region15: #{tpu_custom_call.1} parent=1 // pred_check_branch
      %38 = sbr.rel (0) target = $region17
    $region16: #{tpu_custom_call.1} parent=1 // pred_region
      %39 = dma.done [#allocation3], 1792
    $region17: #{tpu_custom_call.1} parent=1 // pred_fallthru
      _
    // Predicated region
    $region18: #{tpu_custom_call.1} parent=1 // pred_check
      _
    $region19: #{tpu_custom_call.1} parent=1 // pred_check_branch
      %41 = sbr.rel (0) target = $region21
    $region20: #{tpu_custom_call.1} parent=1 // pred_region
      %42 = dma.done [#allocation6], 12544
    $region21: #{tpu_custom_call.1} parent=1 // pred_fallthru
      _
    %v43 = vld [vmem:[#allocation2] sm:$0xff]
    %v44 = vld [vmem:[#allocation2 + $0x8] sm:$0xff]
    %v45 = vld [vmem:[#allocation2 + $0x10] sm:$0xff]
    %v46 = vld [vmem:[#allocation2 + $0x18] sm:$0xff]
    %v47 = vld [vmem:[#allocation2 + $0x20] sm:$0xff]
    %v48 = vld [vmem:[#allocation2 + $0x28] sm:$0xff]
    %v49 = vld [vmem:[#allocation2 + $0x30] sm:$0xff]
    %v50 = vld [vmem:[#allocation2 + $0x38] sm:$0xff]
    %v51 = vld [vmem:[#allocation2 + $0x40] sm:$0xff]
    %v52 = vld [vmem:[#allocation2 + $0x48] sm:$0xff]
    %v53 = vld [vmem:[#allocation2 + $0x50] sm:$0xff]
    %v54 = vld [vmem:[#allocation2 + $0x58] sm:$0xff]
    %v55 = vld [vmem:[#allocation2 + $0x60] sm:$0xff]
    %v56 = vld [vmem:[#allocation2 + $0x68] sm:$0xff]
    %v57 = vld [vmem:[#allocation5] sm:$0xff]
    %v58 = vld [vmem:[#allocation5 + $0x8] sm:$0xff]
    %v59 = vld [vmem:[#allocation5 + $0x10] sm:$0xff]
    %v60 = vld [vmem:[#allocation5 + $0x18] sm:$0xff]
    %v61 = vld [vmem:[#allocation5 + $0x20] sm:$0xff]
    %v62 = vld [vmem:[#allocation5 + $0x28] sm:$0xff]
    %v63 = vld [vmem:[#allocation5 + $0x30] sm:$0xff]
    %v64 = vld [vmem:[#allocation5 + $0x38] sm:$0xff]
    %v65 = vld [vmem:[#allocation5 + $0x40] sm:$0xff]
    %v66 = vld [vmem:[#allocation5 + $0x48] sm:$0xff]
    %v67 = vld [vmem:[#allocation5 + $0x50] sm:$0xff]
    %v68 = vld [vmem:[#allocation5 + $0x58] sm:$0xff]
    %v69 = vld [vmem:[#allocation5 + $0x60] sm:$0xff]
    %v70 = vld [vmem:[#allocation5 + $0x68] sm:$0xff]
    %v71 = vld [vmem:[#allocation5 + $0x70] sm:$0xff]
    %v72 = vld [vmem:[#allocation5 + $0x78] sm:$0xff]
    %v73 = vld [vmem:[#allocation5 + $0x80] sm:$0xff]
    %v74 = vld [vmem:[#allocation5 + $0x88] sm:$0xff]
    %v75 = vld [vmem:[#allocation5 + $0x90] sm:$0xff]
    %v76 = vld [vmem:[#allocation5 + $0x98] sm:$0xff]
    %v77 = vld [vmem:[#allocation5 + $0xa0] sm:$0xff]
    %v78 = vld [vmem:[#allocation5 + $0xa8] sm:$0xff]
    %v79 = vld [vmem:[#allocation5 + $0xb0] sm:$0xff]
    %v80 = vld [vmem:[#allocation5 + $0xb8] sm:$0xff]
    %v81 = vld [vmem:[#allocation5 + $0xc0] sm:$0xff]
    %v82 = vld [vmem:[#allocation5 + $0xc8] sm:$0xff]
    %v83 = vld [vmem:[#allocation5 + $0xd0] sm:$0xff]
    %v84 = vld [vmem:[#allocation5 + $0xd8] sm:$0xff]
    %v85 = vld [vmem:[#allocation5 + $0xe0] sm:$0xff]
    %v86 = vld [vmem:[#allocation5 + $0xe8] sm:$0xff]
    %v87 = vld [vmem:[#allocation5 + $0xf0] sm:$0xff]
    %v88 = vld [vmem:[#allocation5 + $0xf8] sm:$0xff]
    %v89 = vld [vmem:[#allocation5 + $0x100] sm:$0xff]
    %v90 = vld [vmem:[#allocation5 + $0x108] sm:$0xff]
    %v91 = vld [vmem:[#allocation5 + $0x110] sm:$0xff]
    %v92 = vld [vmem:[#allocation5 + $0x118] sm:$0xff]
    %v93 = vld [vmem:[#allocation5 + $0x120] sm:$0xff]
    %v94 = vld [vmem:[#allocation5 + $0x128] sm:$0xff]
    %v95 = vld [vmem:[#allocation5 + $0x130] sm:$0xff]
    %v96 = vld [vmem:[#allocation5 + $0x138] sm:$0xff]
    %v97 = vld [vmem:[#allocation5 + $0x140] sm:$0xff]
    %v98 = vld [vmem:[#allocation5 + $0x148] sm:$0xff]
    %v99 = vld [vmem:[#allocation5 + $0x150] sm:$0xff]
    %v100 = vld [vmem:[#allocation5 + $0x158] sm:$0xff]
    %v101 = vld [vmem:[#allocation5 + $0x160] sm:$0xff]
    %v102 = vld [vmem:[#allocation5 + $0x168] sm:$0xff]
    %v103 = vld [vmem:[#allocation5 + $0x170] sm:$0xff]
    %v104 = vld [vmem:[#allocation5 + $0x178] sm:$0xff]
    %v105 = vld [vmem:[#allocation5 + $0x180] sm:$0xff]
    %v106 = vld [vmem:[#allocation5 + $0x188] sm:$0xff]
    %v107 = vld [vmem:[#allocation5 + $0x190] sm:$0xff]
    %v108 = vld [vmem:[#allocation5 + $0x198] sm:$0xff]
    %v109 = vld [vmem:[#allocation5 + $0x1a0] sm:$0xff]
    %v110 = vld [vmem:[#allocation5 + $0x1a8] sm:$0xff]
    %v111 = vld [vmem:[#allocation5 + $0x1b0] sm:$0xff]
    %v112 = vld [vmem:[#allocation5 + $0x1b8] sm:$0xff]
    %v113 = vld [vmem:[#allocation5 + $0x1c0] sm:$0xff]
    %v114 = vld [vmem:[#allocation5 + $0x1c8] sm:$0xff]
    %v115 = vld [vmem:[#allocation5 + $0x1d0] sm:$0xff]
    %v116 = vld [vmem:[#allocation5 + $0x1d8] sm:$0xff]
    %v117 = vld [vmem:[#allocation5 + $0x1e0] sm:$0xff]
    %v118 = vld [vmem:[#allocation5 + $0x1e8] sm:$0xff]
    %v119 = vld [vmem:[#allocation5 + $0x1f0] sm:$0xff]
    %v120 = vld [vmem:[#allocation5 + $0x1f8] sm:$0xff]
    %v121 = vld [vmem:[#allocation5 + $0x200] sm:$0xff]
    %v122 = vld [vmem:[#allocation5 + $0x208] sm:$0xff]
    %v123 = vld [vmem:[#allocation5 + $0x210] sm:$0xff]
    %v124 = vld [vmem:[#allocation5 + $0x218] sm:$0xff]
    %v125 = vld [vmem:[#allocation5 + $0x220] sm:$0xff]
    %v126 = vld [vmem:[#allocation5 + $0x228] sm:$0xff]
    %v127 = vld [vmem:[#allocation5 + $0x230] sm:$0xff]
    %v128 = vld [vmem:[#allocation5 + $0x238] sm:$0xff]
    %v129 = vld [vmem:[#allocation5 + $0x240] sm:$0xff]
    %v130 = vld [vmem:[#allocation5 + $0x248] sm:$0xff]
    %v131 = vld [vmem:[#allocation5 + $0x250] sm:$0xff]
    %v132 = vld [vmem:[#allocation5 + $0x258] sm:$0xff]
    %v133 = vld [vmem:[#allocation5 + $0x260] sm:$0xff]
    %v134 = vld [vmem:[#allocation5 + $0x268] sm:$0xff]
    %v135 = vld [vmem:[#allocation5 + $0x270] sm:$0xff]
    %v136 = vld [vmem:[#allocation5 + $0x278] sm:$0xff]
    %v137 = vld [vmem:[#allocation5 + $0x280] sm:$0xff]
    %v138 = vld [vmem:[#allocation5 + $0x288] sm:$0xff]
    %v139 = vld [vmem:[#allocation5 + $0x290] sm:$0xff]
    %v140 = vld [vmem:[#allocation5 + $0x298] sm:$0xff]
    %v141 = vld [vmem:[#allocation5 + $0x2a0] sm:$0xff]
    %v142 = vld [vmem:[#allocation5 + $0x2a8] sm:$0xff]
    %v143 = vld [vmem:[#allocation5 + $0x2b0] sm:$0xff]
    %v144 = vld [vmem:[#allocation5 + $0x2b8] sm:$0xff]
    %v145 = vld [vmem:[#allocation5 + $0x2c0] sm:$0xff]
    %v146 = vld [vmem:[#allocation5 + $0x2c8] sm:$0xff]
    %v147 = vld [vmem:[#allocation5 + $0x2d0] sm:$0xff]
    %v148 = vld [vmem:[#allocation5 + $0x2d8] sm:$0xff]
    %v149 = vld [vmem:[#allocation5 + $0x2e0] sm:$0xff]
    %v150 = vld [vmem:[#allocation5 + $0x2e8] sm:$0xff]
    %v151 = vld [vmem:[#allocation5 + $0x2f0] sm:$0xff]
    %v152 = vld [vmem:[#allocation5 + $0x2f8] sm:$0xff]
    %v153 = vld [vmem:[#allocation5 + $0x300] sm:$0xff]
    %v154 = vld [vmem:[#allocation5 + $0x308] sm:$0xff]
    %v155 = vld [vmem:[%s2] sm:$0x1]
    %v157 = vlaneseq
    %v158 = vshrl.u32 %v157, 7
    %v159 = vsub.s32 0, %v158
    %v160 = vrot.slane %v155, %v159
    %vm162 = vcmask 130048
    %v164 = vsel %vm162, %v49, 0
    %v167 = vsel %vm162, %v56, 0
    %169 = vmatprep.subr.mxu0 0.0
    %170 = vmatpush1.msra.mxu0 %v57
    %171 = vmatprep.subr.mxu0 0.0
    %172 = vmatpush1.msra.mxu0 %v58
    %173 = vmatprep.subr.mxu0 0.0
    %174 = vmatpush1.msra.mxu0 %v59
    %175 = vmatprep.subr.mxu0 0.0
    %176 = vmatpush1.msra.mxu0 %v60
    %177 = vmatprep.subr.mxu0 0.0
    %178 = vmatpush1.msra.mxu0 %v61
    %179 = vmatprep.subr.mxu0 0.0
    %180 = vmatpush1.msra.mxu0 %v62
    %181 = vmatprep.subr.mxu0 0.0
    %182 = vmatpush1.msra.mxu0 %v63
    %183 = vmatprep.subr.mxu0 0.0
    %184 = vmatpush1.msra.mxu0 %v64
    %185 = vmatprep.subr.mxu0 0.0
    %186 = vmatpush1.msra.mxu0 %v65
    %187 = vmatprep.subr.mxu0 0.0
    %188 = vmatpush1.msra.mxu0 %v66
    %189 = vmatprep.subr.mxu0 0.0
    %190 = vmatpush1.msra.mxu0 %v67
    %191 = vmatprep.subr.mxu0 0.0
    %192 = vmatpush1.msra.mxu0 %v68
    %193 = vmatprep.subr.mxu0 0.0
    %194 = vmatpush1.msra.mxu0 %v69
    %195 = vmatprep.subr.mxu0 0.0
    %196 = vmatpush1.msra.mxu0 %v70
    %197 = vmatprep.subr.mxu0 0.0
    %198 = vmatpush1.msra.mxu0 %v71
    %199 = vmatprep.subr.mxu0 0.0
    %200 = vmatpush1.msra.mxu0 %v72
    %201 = vmatprep.subr.mxu0 0.0
    %202 = vmatpush1.msra.mxu0 %v73
    %203 = vmatprep.subr.mxu0 0.0
    %204 = vmatpush1.msra.mxu0 %v74
    %205 = vmatprep.subr.mxu0 0.0
    %206 = vmatpush1.msra.mxu0 %v75
    %207 = vmatprep.subr.mxu0 0.0
    %208 = vmatpush1.msra.mxu0 %v76
    %209 = vmatprep.subr.mxu0 0.0
    %210 = vmatpush1.msra.mxu0 %v77
    %211 = vmatprep.subr.mxu0 0.0
    %212 = vmatpush1.msra.mxu0 %v78
    %213 = vmatprep.subr.mxu0 0.0
    %214 = vmatpush1.msra.mxu0 %v79
    %215 = vmatprep.subr.mxu0 0.0
    %216 = vmatpush1.msra.mxu0 %v80
    %217 = vmatprep.subr.mxu0 0.0
    %218 = vmatpush1.msra.mxu0 %v81
    %219 = vmatprep.subr.mxu0 0.0
    %220 = vmatpush1.msra.mxu0 %v82
    %221 = vmatprep.subr.mxu0 0.0
    %222 = vmatpush1.msra.mxu0 %v83
    %223 = vmatprep.subr.mxu0 0.0
    %224 = vmatpush1.msra.mxu0 %v84
    %225 = vmatprep.subr.mxu0 0.0
    %226 = vmatpush1.msra.mxu0 %v85
    %227 = vmatprep.subr.mxu0 0.0
    %228 = vmatpush1.msra.mxu0 %v86
    %229 = vmatprep.subr.mxu0 0.0
    %230 = vmatpush1.msra.mxu0 %v87
    %231 = vmatprep.subr.mxu0 0.0
    %232 = vmatpush1.msra.mxu0 %v88
    %233 = vmatprep.mubr.f32.mxu0 %v44
    %234 = vmatmul.mubr.f32.gmra.mrb[0].mxu0 %v43
    %v235 = vpop.f32.mrb[0].mxu0
    %v236 = vadd.f32 %v160, %v235
    %v237 = vpop.f32.mrb[0].mxu0
    %238 = vmatprep.mubr.f32.mxu0 %v51
    %239 = vmatmul.mubr.f32.gmra.mrb[0].mxu0 %v50
    %v240 = vpop.f32.mrb[0].mxu0
    %v241 = vadd.f32 %v160, %v240
    %v242 = vpop.f32.mrb[0].mxu0
    %243 = vdwg.mxu0
    %244 = vmatprep.subr.mxu0 0.0
    %245 = vmatpush1.msra.mxu0 %v89
    %246 = vmatprep.subr.mxu0 0.0
    %247 = vmatpush1.msra.mxu0 %v90
    %248 = vmatprep.subr.mxu0 0.0
    %249 = vmatpush1.msra.mxu0 %v91
    %250 = vmatprep.subr.mxu0 0.0
    %251 = vmatpush1.msra.mxu0 %v92
    %252 = vmatprep.subr.mxu0 0.0
    %253 = vmatpush1.msra.mxu0 %v93
    %254 = vmatprep.subr.mxu0 0.0
    %255 = vmatpush1.msra.mxu0 %v94
    %256 = vmatprep.subr.mxu0 0.0
    %257 = vmatpush1.msra.mxu0 %v95
    %258 = vmatprep.subr.mxu0 0.0
    %259 = vmatpush1.msra.mxu0 %v96
    %260 = vmatprep.subr.mxu0 0.0
    %261 = vmatpush1.msra.mxu0 %v97
    %262 = vmatprep.subr.mxu0 0.0
    %263 = vmatpush1.msra.mxu0 %v98
    %264 = vmatprep.subr.mxu0 0.0
    %265 = vmatpush1.msra.mxu0 %v99
    %266 = vmatprep.subr.mxu0 0.0
    %267 = vmatpush1.msra.mxu0 %v100
    %268 = vmatprep.subr.mxu0 0.0
    %269 = vmatpush1.msra.mxu0 %v101
    %270 = vmatprep.subr.mxu0 0.0
    %271 = vmatpush1.msra.mxu0 %v102
    %272 = vmatprep.subr.mxu0 0.0
    %273 = vmatpush1.msra.mxu0 %v103
    %274 = vmatprep.subr.mxu0 0.0
    %275 = vmatpush1.msra.mxu0 %v104
    %276 = vmatprep.subr.mxu0 0.0
    %277 = vmatpush1.msra.mxu0 %v105
    %278 = vmatprep.subr.mxu0 0.0
    %279 = vmatpush1.msra.mxu0 %v106
    %280 = vmatprep.subr.mxu0 0.0
    %281 = vmatpush1.msra.mxu0 %v107
    %282 = vmatprep.subr.mxu0 0.0
    %283 = vmatpush1.msra.mxu0 %v108
    %284 = vmatprep.subr.mxu0 0.0
    %285 = vmatpush1.msra.mxu0 %v109
    %286 = vmatprep.subr.mxu0 0.0
    %287 = vmatpush1.msra.mxu0 %v110
    %288 = vmatprep.subr.mxu0 0.0
    %289 = vmatpush1.msra.mxu0 %v111
    %290 = vmatprep.subr.mxu0 0.0
    %291 = vmatpush1.msra.mxu0 %v112
    %292 = vmatprep.subr.mxu0 0.0
    %293 = vmatpush1.msra.mxu0 %v113
    %294 = vmatprep.subr.mxu0 0.0
    %295 = vmatpush1.msra.mxu0 %v114
    %296 = vmatprep.subr.mxu0 0.0
    %297 = vmatpush1.msra.mxu0 %v115
    %298 = vmatprep.subr.mxu0 0.0
    %299 = vmatpush1.msra.mxu0 %v116
    %300 = vmatprep.subr.mxu0 0.0
    %301 = vmatpush1.msra.mxu0 %v117
    %302 = vmatprep.subr.mxu0 0.0
    %303 = vmatpush1.msra.mxu0 %v118
    %304 = vmatprep.subr.mxu0 0.0
    %305 = vmatpush1.msra.mxu0 %v119
    %306 = vmatprep.subr.mxu0 0.0
    %307 = vmatpush1.msra.mxu0 %v120
    %308 = vmatprep.mubr.f32.mxu0 %v46
    %309 = vmatmul.mubr.f32.gmra.mrb[0].mxu0 %v45
    %v310 = vpop.f32.mrb[0].mxu0
    %v311 = vadd.f32 %v236, %v310
    %v312 = vpop.f32.mrb[0].mxu0
    %313 = vmatprep.mubr.f32.mxu0 %v53
    %314 = vmatmul.mubr.f32.gmra.mrb[0].mxu0 %v52
    %v315 = vpop.f32.mrb[0].mxu0
    %v316 = vadd.f32 %v241, %v315
    %v317 = vpop.f32.mrb[0].mxu0
    %318 = vdwg.mxu0
    %319 = vmatprep.subr.mxu0 0.0
    %320 = vmatpush1.msra.mxu0 %v121
    %321 = vmatprep.subr.mxu0 0.0
    %322 = vmatpush1.msra.mxu0 %v122
    %323 = vmatprep.subr.mxu0 0.0
    %324 = vmatpush1.msra.mxu0 %v123
    %325 = vmatprep.subr.mxu0 0.0
    %326 = vmatpush1.msra.mxu0 %v124
    %327 = vmatprep.subr.mxu0 0.0
    %328 = vmatpush1.msra.mxu0 %v125
    %329 = vmatprep.subr.mxu0 0.0
    %330 = vmatpush1.msra.mxu0 %v126
    %331 = vmatprep.subr.mxu0 0.0
    %332 = vmatpush1.msra.mxu0 %v127
    %333 = vmatprep.subr.mxu0 0.0
    %334 = vmatpush1.msra.mxu0 %v128
    %335 = vmatprep.subr.mxu0 0.0
    %336 = vmatpush1.msra.mxu0 %v129
    %337 = vmatprep.subr.mxu0 0.0
    %338 = vmatpush1.msra.mxu0 %v130
    %339 = vmatprep.subr.mxu0 0.0
    %340 = vmatpush1.msra.mxu0 %v131
    %341 = vmatprep.subr.mxu0 0.0
    %342 = vmatpush1.msra.mxu0 %v132
    %343 = vmatprep.subr.mxu0 0.0
    %344 = vmatpush1.msra.mxu0 %v133
    %345 = vmatprep.subr.mxu0 0.0
    %346 = vmatpush1.msra.mxu0 %v134
    %347 = vmatprep.subr.mxu0 0.0
    %348 = vmatpush1.msra.mxu0 %v135
    %349 = vmatprep.subr.mxu0 0.0
    %350 = vmatpush1.msra.mxu0 %v136
    %351 = vmatprep.subr.mxu0 0.0
    %352 = vmatpush1.msra.mxu0 %v137
    %353 = vmatprep.subr.mxu0 0.0
    %354 = vmatpush1.msra.mxu0 %v138
    %355 = vmatprep.subr.mxu0 0.0
    %356 = vmatpush1.msra.mxu0 %v139
    %357 = vmatprep.subr.mxu0 0.0
    %358 = vmatpush1.msra.mxu0 %v140
    %359 = vmatprep.subr.mxu0 0.0
    %360 = vmatpush1.msra.mxu0 %v141
    %361 = vmatprep.subr.mxu0 0.0
    %362 = vmatpush1.msra.mxu0 %v142
    %363 = vmatprep.subr.mxu0 0.0
    %364 = vmatpush1.msra.mxu0 %v143
    %365 = vmatprep.subr.mxu0 0.0
    %366 = vmatpush1.msra.mxu0 %v144
    %367 = vmatprep.subr.mxu0 0.0
    %368 = vmatpush1.msra.mxu0 %v145
    %369 = vmatprep.subr.mxu0 0.0
    %370 = vmatpush1.msra.mxu0 %v146
    %371 = vmatprep.subr.mxu0 0.0
    %372 = vmatpush1.msra.mxu0 %v147
    %373 = vmatprep.subr.mxu0 0.0
    %374 = vmatpush1.msra.mxu0 %v148
    %375 = vmatprep.subr.mxu0 0.0
    %376 = vmatpush1.msra.mxu0 %v149
    %377 = vmatprep.subr.mxu0 0.0
    %378 = vmatpush1.msra.mxu0 %v150
    %379 = vmatprep.subr.mxu0 0.0
    %380 = vmatpush1.msra.mxu0 %v151
    %381 = vmatprep.subr.mxu0 0.0
    %382 = vmatpush1.msra.mxu0 %v152
    %383 = vmatprep.mubr.f32.mxu0 %v48
    %384 = vmatmul.mubr.f32.gmra.mrb[0].mxu0 %v47
    %v385 = vpop.f32.mrb[0].mxu0
    %v386 = vadd.f32 %v311, %v385
    %v387 = vpop.f32.mrb[0].mxu0
    %388 = vmatprep.mubr.f32.mxu0 %v55
    %389 = vmatmul.mubr.f32.gmra.mrb[0].mxu0 %v54
    %v390 = vpop.f32.mrb[0].mxu0
    %v391 = vadd.f32 %v316, %v390
    %v392 = vpop.f32.mrb[0].mxu0
    %393 = vdwg.mxu0
    %394 = vmatprep.subr.mxu0 0.0
    %395 = vmatpush1.msra.mxu0 %v153
    %396 = vmatprep.subr.mxu0 0.0
    %397 = vmatpush1.msra.mxu0 %v154
    %398 = vmatprep.subr.mxu0 0.0
    %399 = vmatpush1.msra.mxu0 0.0
    %400 = vmatprep.subr.mxu0 0.0
    %401 = vmatpush1.msra.mxu0 0.0
    %402 = vmatprep.subr.mxu0 0.0
    %403 = vmatpush1.msra.mxu0 0.0
    %404 = vmatprep.subr.mxu0 0.0
    %405 = vmatpush1.msra.mxu0 0.0
    %406 = vmatprep.subr.mxu0 0.0
    %407 = vmatpush1.msra.mxu0 0.0
    %408 = vmatprep.subr.mxu0 0.0
    %409 = vmatpush1.msra.mxu0 0.0
    %410 = vmatprep.subr.mxu0 0.0
    %411 = vmatpush1.msra.mxu0 0.0
    %412 = vmatprep.subr.mxu0 0.0
    %413 = vmatpush1.msra.mxu0 0.0
    %414 = vmatprep.subr.mxu0 0.0
    %415 = vmatpush1.msra.mxu0 0.0
    %416 = vmatprep.subr.mxu0 0.0
    %417 = vmatpush1.msra.mxu0 0.0
    %418 = vmatprep.subr.mxu0 0.0
    %419 = vmatpush1.msra.mxu0 0.0
    %420 = vmatprep.subr.mxu0 0.0
    %421 = vmatpush1.msra.mxu0 0.0
    %422 = vmatprep.subr.mxu0 0.0
    %423 = vmatpush1.msra.mxu0 0.0
    %424 = vmatprep.subr.mxu0 0.0
    %425 = vmatpush1.msra.mxu0 0.0
    %426 = vmatprep.subr.mxu0 0.0
    %427 = vmatpush1.msra.mxu0 0.0
    %428 = vmatprep.subr.mxu0 0.0
    %429 = vmatpush1.msra.mxu0 0.0
    %430 = vmatprep.subr.mxu0 0.0
    %431 = vmatpush1.msra.mxu0 0.0
    %432 = vmatprep.subr.mxu0 0.0
    %433 = vmatpush1.msra.mxu0 0.0
    %434 = vmatprep.subr.mxu0 0.0
    %435 = vmatpush1.msra.mxu0 0.0
    %436 = vmatprep.subr.mxu0 0.0
    %437 = vmatpush1.msra.mxu0 0.0
    %438 = vmatprep.subr.mxu0 0.0
    %439 = vmatpush1.msra.mxu0 0.0
    %440 = vmatprep.subr.mxu0 0.0
    %441 = vmatpush1.msra.mxu0 0.0
    %442 = vmatprep.subr.mxu0 0.0
    %443 = vmatpush1.msra.mxu0 0.0
    %444 = vmatprep.subr.mxu0 0.0
    %445 = vmatpush1.msra.mxu0 0.0
    %446 = vmatprep.subr.mxu0 0.0
    %447 = vmatpush1.msra.mxu0 0.0
    %448 = vmatprep.subr.mxu0 0.0
    %449 = vmatpush1.msra.mxu0 0.0
    %450 = vmatprep.subr.mxu0 0.0
    %451 = vmatpush1.msra.mxu0 0.0
    %452 = vmatprep.subr.mxu0 0.0
    %453 = vmatpush1.msra.mxu0 0.0
    %454 = vmatprep.subr.mxu0 0.0
    %455 = vmatpush1.msra.mxu0 0.0
    %456 = vmatprep.subr.mxu0 0.0
    %457 = vmatpush1.msra.mxu0 0.0
    %458 = vmatprep.mubr.f32.mxu0 0.0
    %459 = vmatmul.mubr.f32.gmra.mrb[0].mxu0 %v164
    %v460 = vpop.f32.mrb[0].mxu0
    %v461 = vadd.f32 %v386, %v460
    %v462 = vpop.f32.mrb[0].mxu0
    %463 = vmatprep.mubr.f32.mxu0 0.0
    %464 = vmatmul.mubr.f32.gmra.mrb[0].mxu0 %v167
    %v465 = vpop.f32.mrb[0].mxu0
    %v466 = vadd.f32 %v391, %v465
    %v467 = vpop.f32.mrb[0].mxu0
    %468 = vdwg.mxu0
    %469 = vmax.xlane.f32.xlu0 %v461
    %v470 = vpop.xlane.xlu0 %469
    %471 = vmax.xlane.f32.xlu0 %v466
    %v472 = vpop.xlane.xlu0 %471
    %v473 = vsub.f32 %v461, %v470
    %v474 = vsub.f32 %v466, %v472
    %v475 = vmul.f32 %v473, 1.442695
    %v476 = vpow.pop %v475
    %v477 = vmul.f32 %v474, 1.442695
    %v478 = vpow.pop %v477
    %479 = vadd.xlane.f32.xlu0 %v476
    %v480 = vpop.xlane.xlu0 %479
    %481 = vadd.xlane.f32.xlu0 %v478
    %v482 = vpop.xlane.xlu0 %481
    %v483 = vlog2.pop %v480
    %v484 = vmul.f32 %v483, 0.6931472
    %v485 = vlog2.pop %v482
    %v486 = vmul.f32 %v485, 0.6931472
    %v487 = vsub.f32 %v473, %v484
    %v488 = vsub.f32 %v474, %v486
    %489 = vst [vmem:[#allocation7] sm:$0xff] %v487
    %490 = vst [vmem:[#allocation7 + $0x8] sm:$0xff] %v488
    // Predicated region
    $region22: #{tpu_custom_call.1} parent=1 // pred_check
      _
    $region23: #{tpu_custom_call.1} parent=1 // pred_check_branch
      %492 = sbr.rel (0) target = $region25
    $region24: #{tpu_custom_call.1} parent=1 // pred_region
      %s494 = ssub.s32 256, 256
      %495 = vsyncadd [#allocation4], %s494
      %s496 = sshll.u32 [#allocation7], 4
      %s497 = int_to_ptr.vmem [resolvable:$true] %s496
      %502 = dma.vmem_to_hbm [thread:$0]  %s497, 256, %s3, [#allocation4], 128, 128, 8
    $region25: #{tpu_custom_call.1} parent=1 // pred_fallthru
      _
    // Predicated region
    $region26: #{tpu_custom_call.1} parent=1 // pred_check
      _
    $region27: #{tpu_custom_call.1} parent=1 // pred_check_branch
      %504 = sbr.rel (0) target = $region29
    $region28: #{tpu_custom_call.1} parent=1 // pred_region
      %505 = dma.done [#allocation4], 256
    $region29: #{tpu_custom_call.1} parent=1 // pred_fallthru
      _
    %506 = vsyncpa [#allocation3], 1
    %507 = vsyncpa [#allocation6], 1
    %508 = vsyncpa [#allocation4], 1

</llo_original>
